<compile_context>
chip_gen: v6e
topology: v6e:2x2x1
jax: 0.10.0
libtpu: 0.0.40
codegen_flags: <defaults>
</compile_context>

<pallas_src>
import functools

import jax
import jax.numpy as jnp
from jax.experimental import pallas as pl
from jax.experimental.pallas import tpu as pltpu


def _round_up(x: int, m: int) -> int:
    return ((x + m - 1) // m) * m


def _onehot_gather_kernel(idx_ref, tbl_ref, out_ref, *, num_rows: int):
    # idx_ref: (TM, 1)    int32 -- indices for this output block.
    # tbl_ref: (V_pad, D) f32   -- whole table, VMEM resident (const block idx).
    # out_ref: (TM, D)    f32   -- dense output block (D == full last dim).
    idx = idx_ref[...]
    # torch indexing wraps negatives; positive OOB selects no row -> zeros.
    idx = jnp.where(idx < 0, idx + num_rows, idx)
    tm = idx_ref.shape[0]
    v_pad = tbl_ref.shape[0]
    row_ids = jax.lax.broadcasted_iota(jnp.int32, (tm, v_pad), 1)
    onehot = (idx == row_ids).astype(tbl_ref.dtype)            # (TM, V_pad)
    # HIGHEST precision keeps the f32 table exact through the MXU passes.
    out_ref[...] = jnp.dot(
        onehot, tbl_ref[...],
        preferred_element_type=jnp.float32,
        precision=jax.lax.Precision.HIGHEST,
    ).astype(out_ref.dtype)


def make_atom_featurizer(table: jax.Array, *, tm_cap: int = 2048,
                         small_n_threshold: int = 0):
    """Build a jitted lookup(x) == torch.squeeze(atom_fea[x.long()]).

    table: (V, D) float32 lookup table.
    tm_cap: max output rows per grid step (2048 keeps v5e scoped VMEM happy;
            raise it together with vmem_limit_bytes if ever needed).
    small_n_threshold: below this many indices use a fused native XLA gather
            instead of launching the Pallas kernel (set 0 here so the demo
            always exercises the kernel; production would use O(4096)).
    """
    V, D = table.shape
    # Pad the one-hot contraction dim to a full 128-lane vreg ONCE at init.
    V_pad = _round_up(max(V, 128), 128)
    table_p = jnp.pad(table, ((0, V_pad - V), (0, 0)))

    kernel = functools.partial(_onehot_gather_kernel, num_rows=V)

    @jax.jit
    def lookup(x: jax.Array) -> jax.Array:
        idx = x.astype(jnp.int32).reshape(-1, 1)                # x.long()
        N = idx.shape[0]

        # Small-N fast path: a native gather of a ~96 KB table fuses with the
        # consumer and avoids the pallas_call launch entirely.
        if N <= small_n_threshold:
            safe = jnp.where(idx[:, 0] < 0, idx[:, 0] + V, idx[:, 0])
            out = jnp.take(table, safe, axis=0)
            return jnp.squeeze(out.reshape(x.shape + (D,)))

        # Output-row block: multiple of 8, capped at tm_cap, sized so the grid
        # has >= 2 blocks whenever possible (feeds both v7x TensorCores).
        tm = min(tm_cap, max(8, _round_up(pl.cdiv(N, 2), 8)))
        grid = (pl.cdiv(N, tm),)                                 # ragged grid

        gathered = pl.pallas_call(
            kernel,
            # Final (N, 200) result straight from the kernel: no D padding,
            # no N padding, no post-call slice.
            out_shape=jax.ShapeDtypeStruct((N, D), table.dtype),
            grid=grid,
            in_specs=[
                pl.BlockSpec((tm, 1), lambda i: (i, 0)),         # indices
                # Whole table resident; constant block index -> fetched once.
                # (pl.Buffered(1) would also drop the redundant ~100 KB second
                #  buffer -- negligible, left at the default for portability.)
                pl.BlockSpec((V_pad, D), lambda i: (0, 0)),
            ],
            out_specs=pl.BlockSpec((tm, D), lambda i: (i, 0)),
            compiler_params=pltpu.CompilerParams(
                dimension_semantics=("parallel",),               # 2 TCs on v7x
            ),
            cost_estimate=pl.CostEstimate(
                flops=2 * N * V_pad * D,
                transcendentals=0,
                bytes_accessed=(N * D * 4        # output write
                                + N * 4          # indices
                                + V_pad * D * 4  # table (read once)
                                ),
            ),
        )(idx, table_p)

        out = gathered.reshape(x.shape + (D,))
        # torch.squeeze removes ALL size-1 dims (incl. size-1 batch dims).
        return jnp.squeeze(out)

    return lookup


def make_atom_fea_table(num_elements: int = 118, dim: int = 200) -> jax.Array:
    """Deterministic synthetic stand-in for the mat2vec.csv table:
    zeros row on top, ones row on the bottom, random rows in between."""
    # TODO(synk): real module reads mat2vec.csv; synthetic table keeps the
    # script self-contained with identical layout/shape semantics.
    key = jax.random.PRNGKey(42)
    mid = jax.random.normal(key, (num_elements, dim), dtype=jnp.float32)
    return jnp.concatenate(
        [jnp.zeros((1, dim), jnp.float32), mid, jnp.ones((1, dim), jnp.float32)],
        axis=0,
    )  # shape (num_elements + 2, dim)


if __name__ == "__main__":
    D = 200
    table = make_atom_fea_table(num_elements=118, dim=D)        # (120, 200)
    lookup = make_atom_featurizer(table)                        # Pallas path

    # Small index input consistent with the forward: batch of atom indices.
    key = jax.random.PRNGKey(0)
    x = jax.random.randint(key, (2, 8), minval=0, maxval=table.shape[0],
                           dtype=jnp.int32)                     # N=16 -> grid=(2,)

    out = jax.block_until_ready(lookup(x))
    ref = jnp.squeeze(jnp.take(table, x.reshape(-1), axis=0).reshape(x.shape + (D,)))
    assert out.shape == ref.shape == (2, 8, D), (out.shape, ref.shape)
    assert bool(jnp.allclose(out, ref, rtol=1e-6, atol=1e-6)), "mismatch (2,8)"

    # Ragged grid (odd N -> masked partial last block) + torch.squeeze of a
    # size-1 batch dim.
    x2 = jax.random.randint(jax.random.PRNGKey(1), (1, 11), minval=0,
                            maxval=table.shape[0], dtype=jnp.int32)
    out2 = jax.block_until_ready(lookup(x2))
    ref2 = jnp.squeeze(jnp.take(table, x2.reshape(-1), axis=0)
                       .reshape(x2.shape + (D,)))
    assert out2.shape == ref2.shape == (11, D), (out2.shape, ref2.shape)
    assert bool(jnp.allclose(out2, ref2, rtol=1e-6, atol=1e-6)), "mismatch (1,11)"

    print("KERNEL_OK")
</pallas_src>

<mosaic_0001>
module attributes {stable_mosaic.version = 11 : i64} {
  func.func @_onehot_gather_kernel(%arg0: i32, %arg1: memref<8x1xi32, #tpu.memory_space<vmem>>, %arg2: memref<128x200xf32, #tpu.memory_space<vmem>>, %arg3: memref<8x200xf32, #tpu.memory_space<vmem>>) attributes {dimension_semantics = [#tpu.dimension_semantics<parallel>], iteration_bounds = array<i64: 2>, scalar_prefetch = 0 : i64, scratch_operands = 0 : i64, tpu.core_type = #tpu.core_type<tc>, window_params = [{transform_indices = @transform_0, window_bounds = array<i64: 8, 1>}, {pipeline_mode = #tpu.pipeline_mode<synchronous>, transform_indices = @transform_1, window_bounds = array<i64: 128, 200>}, {transform_indices = @transform_2, window_bounds = array<i64: 8, 200>}]} {
    %c0 = arith.constant 0 : index
    %c0_0 = arith.constant 0 : index
    %0 = vector.load %arg1[%c0, %c0_0] : memref<8x1xi32, #tpu.memory_space<vmem>>, vector<8x1xi32>
    %c0_i32 = arith.constant 0 : i32
    %1 = vector.broadcast %c0_i32 : i32 to vector<8x1xi32>
    %2 = arith.cmpi slt, %0, %1 : vector<8x1xi32>
    %c120_i32 = arith.constant 120 : i32
    %3 = vector.broadcast %c120_i32 : i32 to vector<8x1xi32>
    %4 = arith.addi %0, %3 : vector<8x1xi32>
    %5 = arith.select %2, %4, %0 : vector<8x1xi1>, vector<8x1xi32>
    %6 = tpu.iota {dimensions = array<i32: 1>} : vector<8x128xi32>
    %7 = vector.broadcast %5 : vector<8x1xi32> to vector<8x128xi32>
    %8 = arith.cmpi eq, %7, %6 : vector<8x128xi32>
    %9 = arith.extui %8 : vector<8x128xi1> to vector<8x128xi32>
    %10 = arith.sitofp %9 : vector<8x128xi32> to vector<8x128xf32>
    %c0_1 = arith.constant 0 : index
    %c0_2 = arith.constant 0 : index
    %11 = vector.load %arg2[%c0_1, %c0_2] : memref<128x200xf32, #tpu.memory_space<vmem>>, vector<128x200xf32>
    %cst = arith.constant dense<0.000000e+00> : vector<8x200xf32>
    %12 = tpu.matmul %10, %11, %cst {dimension_numbers = #tpu.dot_dimension_numbers<[1], [0], [0], [1], [0, 0, 1, 1], [], []>, precision = #tpu.contract_precision<fp32>} : vector<8x128xf32>, vector<128x200xf32>, vector<8x200xf32> -> vector<8x200xf32>
    %c0_3 = arith.constant 0 : index
    %c0_4 = arith.constant 0 : index
    %13 = vector.load %arg3[%c0_3, %c0_4] : memref<8x200xf32, #tpu.memory_space<vmem>>, vector<8x200xf32>
    tpu.vector_store %arg3[%c0_3, %c0_4], %12 {strides = array<i32>} : memref<8x200xf32, #tpu.memory_space<vmem>>, vector<8x200xf32>,
    return
  }
  func.func @transform_0(%arg0: i32) -> (i32, i32) {
    %c0_i32 = arith.constant 0 : i32
    %c0_i32_0 = arith.constant 0 : i32
    return %arg0, %c0_i32 : i32, i32
  }
  func.func @transform_1(%arg0: i32) -> (i32, i32) {
    %c0_i32 = arith.constant 0 : i32
    %c0_i32_0 = arith.constant 0 : i32
    %c0_i32_1 = arith.constant 0 : i32
    return %c0_i32, %c0_i32_0 : i32, i32
  }
  func.func @transform_2(%arg0: i32) -> (i32, i32) {
    %c0_i32 = arith.constant 0 : i32
    %c0_i32_0 = arith.constant 0 : i32
    return %arg0, %c0_i32 : i32, i32
  }
}

</mosaic_0001>

<llo_original>
// kernel: lookup.1
$region0: #{lookup.1}
  #allocation0 [shape = 'u32[]', space=smem, size = 0x4, offset = 0x4, fixed_abs, tag = 'smem constant byte address 0x4 - core index']
  #allocation1 [shape = 'u32[144,128]{1,0:T(1,128)}', space=vmem, size = 0x12000, scoped, tag = 'internal scratch']
  %s0 = inlined_call_operand.vmem [shape: s32[16,1], index: 0, kind: input, shape index: {}]
  %s1 = inlined_call_operand.hbm [shape: f32[128,200], index: 1, kind: input, shape index: {}]
  %s2 = inlined_call_operand.hbm [shape: f32[16,200], index: 2, kind: output, shape index: {}]
  %s3 = sld [smem:[#allocation0]]
  $region45: #{lookup.1} parent=0
    _
  %s5 = ssub.s32 1, %s3
  %s6 = scalar_select 0, %s5, %s3
  $region1: #{lookup.1} parent=0
    #allocation2 [shape = 'u8[131072]{0}', space=vmem, size = 0x20000, scoped, tag = 'input window, operand 1, single buffered']
    #allocation3 [shape = 's32[2]{0}', space=sflag, size = 0x8, scoped, tag = 'scoped memory for lookup.1']
    #allocation4 [shape = 's32[2]{0}', space=sflag, size = 0x8, scoped, tag = 'scoped memory for lookup.1']
    #allocation5 [shape = 'u8[16384]{0}', space=vmem, size = 0x4000, scoped, tag = 'output window, operand 0']
    %7 = vsyncpa [#allocation3], 0
    %8 = vsyncpa [#allocation4], 0
    %s9 = scalar_lea.sflag [#allocation4], 1
    %10 = vsyncpa %s9, 0
    loop: start=0, step=1, limit=4
    $region2: #{lookup.1} parent=1 // loop_pre_header
      _
    $region3: #{lookup.1} parent=1 // loop_header
      %s12 = sphi 0, %s16
      %p13 = scmp.ge.s32.totalorder %s12, 4
      %s22 = sphi 0, %s24
      %s25 = sphi 0, %s22
      %s26 = sphi 0, %s25
      %s42 = sphi 0, %s26
      %s46 = sphi 0, %s46
      %s48 = sphi 0, %s46
      %s49 = sphi 0, %s48
      %s63 = sphi 0, %s49
      %s69 = sphi 0, %s71
      %s72 = sphi 0, %s69
      %s73 = sphi 0, %s72
      %s89 = sphi 0, %s73
    $region4: #{lookup.1} parent=1 // loop_header_branch
      %15 = sbr.rel (%p13) target = $region8
    $region5: #{lookup.1} parent=1 // loop_body
      %s17 = ssub.s32 %s12, 1
      %s18 = ssub.s32 %s12, 2
      %s19 = sadd.s32 %s12, 1
      %s20 = ssub.s32 %s12, %s19
      %p21 = scmp.eq.s32.totalorder %s20, 0
      %s23 = sadd.s32 %s22, 1
      %s24 = scalar_select %p21, %s22, %s23
      %p27 = pneg %p21
      %p28 = scmp.eq.s32.totalorder %s12, 1
      %p29 = por %p27, %p28
      %p30 = scmp.ne.s32.totalorder %s22, %s25
      %p31 = scmp.eq.s32.totalorder %s12, 0
      %p32 = por %p30, %p31
      %p33 = scmp.ne.s32.totalorder %s22, %s25
      %p34 = scmp.eq.s32.totalorder %s17, 1
      %p35 = por %p33, %p34
      %p36 = scmp.ne.s32.totalorder %s25, %s26
      %p37 = scmp.eq.s32.totalorder %s17, 0
      %p38 = por %p36, %p37
      %p39 = scmp.ne.s32.totalorder %s25, %s26
      %p40 = scmp.eq.s32.totalorder %s18, 1
      %p41 = por %p39, %p40
      %p43 = scmp.ne.s32.totalorder %s26, %s42
      %p44 = scmp.eq.s32.totalorder %s18, 0
      %p45 = por %p43, %p44
      %s47 = sadd.s32 %s46, 1
      %p50 = scmp.eq.s32.totalorder %s12, 1
      %p51 = scmp.ne.s32.totalorder %s46, %s48
      %p52 = scmp.eq.s32.totalorder %s12, 0
      %p53 = por %p51, %p52
      %p54 = scmp.ne.s32.totalorder %s46, %s48
      %p55 = scmp.eq.s32.totalorder %s17, 1
      %p56 = por %p54, %p55
      %p57 = scmp.ne.s32.totalorder %s48, %s49
      %p58 = scmp.eq.s32.totalorder %s17, 0
      %p59 = por %p57, %p58
      %p60 = scmp.ne.s32.totalorder %s48, %s49
      %p61 = scmp.eq.s32.totalorder %s18, 1
      %p62 = por %p60, %p61
      %p64 = scmp.ne.s32.totalorder %s49, %s63
      %p65 = scmp.eq.s32.totalorder %s18, 0
      %p66 = por %p64, %p65
      %s67 = ssub.s32 %s12, %s19
      %p68 = scmp.eq.s32.totalorder %s67, 0
      %s70 = sadd.s32 %s69, 1
      %s71 = scalar_select %p68, %s69, %s70
      %p74 = pneg %p68
      %p75 = scmp.eq.s32.totalorder %s12, 1
      %p76 = por %p74, %p75
      %p77 = scmp.ne.s32.totalorder %s69, %s72
      %p78 = scmp.eq.s32.totalorder %s12, 0
      %p79 = por %p77, %p78
      %p80 = scmp.ne.s32.totalorder %s69, %s72
      %p81 = scmp.eq.s32.totalorder %s17, 1
      %p82 = por %p80, %p81
      %p83 = scmp.ne.s32.totalorder %s72, %s73
      %p84 = scmp.eq.s32.totalorder %s17, 0
      %p85 = por %p83, %p84
      %p86 = scmp.ne.s32.totalorder %s72, %s73
      %p87 = scmp.eq.s32.totalorder %s18, 1
      %p88 = por %p86, %p87
      %p90 = scmp.ne.s32.totalorder %s73, %s89
      %p91 = scmp.eq.s32.totalorder %s18, 0
      %p92 = por %p90, %p91
      %p93 = scmp.le.s32.totalorder 1, %s12
      %p94 = scmp.lt.s32.totalorder %s12, 3
      %p95 = pnand %p93, %p94
      %p96 = pneg %p95
      // Predicated region
      $region9: #{lookup.1} parent=5 // pred_check
        _
      $region10: #{lookup.1} parent=5 // pred_check_branch
        %98 = sbr.rel (%p95) target = $region12
      $region11: #{lookup.1} parent=5 // pred_region
        %s99 = ssub.s32 %s12, 1
        // Predicated region
        $region13: #{lookup.1} parent=11 // pred_check
          %p100 = pneg %p59
        $region14: #{lookup.1} parent=11 // pred_check_branch
          %102 = sbr.rel (%p100) target = $region16
        $region15: #{lookup.1} parent=11 // pred_region
          %s104 = ssub.s32 4096, 4096
          %105 = vsyncadd [#allocation3], %s104
          %s106 = sshll.u32 [#allocation2], 4
          %s107 = int_to_ptr.vmem [resolvable:$true] %s106
          %112 = dma.hbm_to_vmem [thread:$0]  %s1, 4096, %s107, [#allocation3], 256, 256, 16
        $region16: #{lookup.1} parent=11 // pred_fallthru
          _
      $region12: #{lookup.1} parent=5 // pred_fallthru
        _
      %p113 = scmp.lt.s32.totalorder %s12, 2
      // Predicated region
      $region17: #{lookup.1} parent=5 // pred_check
        %p114 = pneg %p113
      $region18: #{lookup.1} parent=5 // pred_check_branch
        %116 = sbr.rel (%p114) target = $region20
      $region19: #{lookup.1} parent=5 // pred_region
        // Predicated region
        $region21: #{lookup.1} parent=19 // pred_check
          %p117 = pneg %p32
        $region22: #{lookup.1} parent=19 // pred_check_branch
          %119 = sbr.rel (%p117) target = $region24
        $region23: #{lookup.1} parent=19 // pred_region
          %p120 = scmp.lt.s32.totalorder %s12, 1
          %s121 = scalar_select %p120, %s12, 1
          %s122 = smul.addr %s121, 8
          %s123 = scalar_lea.vmem %s0, %s122
        $region24: #{lookup.1} parent=19 // pred_fallthru
          _
      $region20: #{lookup.1} parent=5 // pred_fallthru
        _
      %p124 = scmp.le.s32.totalorder 1, %s12
      %p125 = scmp.lt.s32.totalorder %s12, 3
      %p126 = pnand %p124, %p125
      %p127 = pneg %p126
      // Predicated region
      $region25: #{lookup.1} parent=5 // pred_check
        _
      $region26: #{lookup.1} parent=5 // pred_check_branch
        %129 = sbr.rel (%p126) target = $region28
      $region27: #{lookup.1} parent=5 // pred_region
        %s130 = ssub.s32 %s12, 1
        // Predicated region
        $region29: #{lookup.1} parent=27 // pred_check
          %p131 = pneg %p59
        $region30: #{lookup.1} parent=27 // pred_check_branch
          %133 = sbr.rel (%p131) target = $region32
        $region31: #{lookup.1} parent=27 // pred_region
          %134 = dma.done [#allocation3], 4096
        $region32: #{lookup.1} parent=27 // pred_fallthru
          _
        %p135 = scmp.lt.s32.totalorder %s17, 1
        %s136 = scalar_select %p135, %s17, 1
        %s137 = smul.addr %s136, 8
        %s138 = scalar_lea.vmem %s0, %s137
        %p139 = pneg %p38
        %p140 = pneg %p35
        %p141 = pneg %p59
        %p142 = pneg %p56
        %p143 = pneg %p85
        %p144 = pneg %p82
        %s145 = sand.u32 %s72, 1
        %s146 = scalar_lea.sflag [#allocation4], %s145
        %s147 = sand.u32 %s72, 1
        %s148 = smul.addr %s147, 16
        %s149 = scalar_lea.vmem [#allocation5], %s148
        %p150 = scmp.lt.s32.totalorder %s17, 1
        %s151 = scalar_select %p150, %s17, 1
        %s152 = smul.addr %s151, 8
        %s153 = scalar_lea.vmem %s0, %s152
        %v154 = vld [vmem:[%s153] sm:$0xff]
        %vm155 = vcmp.lt.s32.totalorder %v154, 0
        %v156 = vadd.s32 %v154, 120
        %v157 = vsel %vm155, %v156, %v154
        %v158 = vlaneseq
        %v159 = vand.u32 %v158, 127
        %160 = vset.pattern.permute.xlu0 0
        %161 = vperm.xlu0 %160, %v157
        %v162 = vpop.permute.xlu0 %161
        %vm163 = vcmp.eq.s32.totalorder %v162, %v159
        %v164 = vsel %vm163, 1, 0
        %v165 = vcvt.s32.f32 %v164
        %v166 = vld [vmem:[#allocation2] sm:$0xff]
        %v167 = vld [vmem:[#allocation2 + $0x8] sm:$0xff]
        %v168 = vld [vmem:[#allocation2 + $0x10] sm:$0xff]
        %v169 = vld [vmem:[#allocation2 + $0x18] sm:$0xff]
        %v170 = vld [vmem:[#allocation2 + $0x20] sm:$0xff]
        %v171 = vld [vmem:[#allocation2 + $0x28] sm:$0xff]
        %v172 = vld [vmem:[#allocation2 + $0x30] sm:$0xff]
        %v173 = vld [vmem:[#allocation2 + $0x38] sm:$0xff]
        %v174 = vld [vmem:[#allocation2 + $0x40] sm:$0xff]
        %v175 = vld [vmem:[#allocation2 + $0x48] sm:$0xff]
        %v176 = vld [vmem:[#allocation2 + $0x50] sm:$0xff]
        %v177 = vld [vmem:[#allocation2 + $0x58] sm:$0xff]
        %v178 = vld [vmem:[#allocation2 + $0x60] sm:$0xff]
        %v179 = vld [vmem:[#allocation2 + $0x68] sm:$0xff]
        %v180 = vld [vmem:[#allocation2 + $0x70] sm:$0xff]
        %v181 = vld [vmem:[#allocation2 + $0x78] sm:$0xff]
        %v182 = vld [vmem:[#allocation2 + $0x80] sm:$0xff]
        %v183 = vld [vmem:[#allocation2 + $0x88] sm:$0xff]
        %v184 = vld [vmem:[#allocation2 + $0x90] sm:$0xff]
        %v185 = vld [vmem:[#allocation2 + $0x98] sm:$0xff]
        %v186 = vld [vmem:[#allocation2 + $0xa0] sm:$0xff]
        %v187 = vld [vmem:[#allocation2 + $0xa8] sm:$0xff]
        %v188 = vld [vmem:[#allocation2 + $0xb0] sm:$0xff]
        %v189 = vld [vmem:[#allocation2 + $0xb8] sm:$0xff]
        %v190 = vld [vmem:[#allocation2 + $0xc0] sm:$0xff]
        %v191 = vld [vmem:[#allocation2 + $0xc8] sm:$0xff]
        %v192 = vld [vmem:[#allocation2 + $0xd0] sm:$0xff]
        %v193 = vld [vmem:[#allocation2 + $0xd8] sm:$0xff]
        %v194 = vld [vmem:[#allocation2 + $0xe0] sm:$0xff]
        %v195 = vld [vmem:[#allocation2 + $0xe8] sm:$0xff]
        %v196 = vld [vmem:[#allocation2 + $0xf0] sm:$0xff]
        %v197 = vld [vmem:[#allocation2 + $0xf8] sm:$0xff]
        %v198 = vand.u32 %v197, 4294901760
        %199 = vmatprep.subr.mxu0 %v198
        %v200 = vand.u32 %v196, 4294901760
        %201 = vmatpush1.msra.mxu0 %v200
        %v202 = vand.u32 %v195, 4294901760
        %203 = vmatprep.subr.mxu0 %v202
        %v204 = vand.u32 %v194, 4294901760
        %205 = vmatpush1.msra.mxu0 %v204
        %v206 = vand.u32 %v193, 4294901760
        %207 = vmatprep.subr.mxu0 %v206
        %v208 = vand.u32 %v192, 4294901760
        %209 = vmatpush1.msra.mxu0 %v208
        %v210 = vand.u32 %v191, 4294901760
        %211 = vmatprep.subr.mxu0 %v210
        %v212 = vand.u32 %v190, 4294901760
        %213 = vmatpush1.msra.mxu0 %v212
        %v214 = vand.u32 %v189, 4294901760
        %215 = vmatprep.subr.mxu0 %v214
        %v216 = vand.u32 %v188, 4294901760
        %217 = vmatpush1.msra.mxu0 %v216
        %v218 = vand.u32 %v187, 4294901760
        %219 = vmatprep.subr.mxu0 %v218
        %v220 = vand.u32 %v186, 4294901760
        %221 = vmatpush1.msra.mxu0 %v220
        %v222 = vand.u32 %v185, 4294901760
        %223 = vmatprep.subr.mxu0 %v222
        %v224 = vand.u32 %v184, 4294901760
        %225 = vmatpush1.msra.mxu0 %v224
        %v226 = vand.u32 %v183, 4294901760
        %227 = vmatprep.subr.mxu0 %v226
        %v228 = vand.u32 %v182, 4294901760
        %229 = vmatpush1.msra.mxu0 %v228
        %v230 = vand.u32 %v181, 4294901760
        %231 = vmatprep.subr.mxu0 %v230
        %v232 = vand.u32 %v180, 4294901760
        %233 = vmatpush1.msra.mxu0 %v232
        %v234 = vand.u32 %v179, 4294901760
        %235 = vmatprep.subr.mxu0 %v234
        %v236 = vand.u32 %v178, 4294901760
        %237 = vmatpush1.msra.mxu0 %v236
        %v238 = vand.u32 %v177, 4294901760
        %239 = vmatprep.subr.mxu0 %v238
        %v240 = vand.u32 %v176, 4294901760
        %241 = vmatpush1.msra.mxu0 %v240
        %v242 = vand.u32 %v175, 4294901760
        %243 = vmatprep.subr.mxu0 %v242
        %v244 = vand.u32 %v174, 4294901760
        %245 = vmatpush1.msra.mxu0 %v244
        %v246 = vand.u32 %v173, 4294901760
        %247 = vmatprep.subr.mxu0 %v246
        %v248 = vand.u32 %v172, 4294901760
        %249 = vmatpush1.msra.mxu0 %v248
        %v250 = vand.u32 %v171, 4294901760
        %251 = vmatprep.subr.mxu0 %v250
        %v252 = vand.u32 %v170, 4294901760
        %253 = vmatpush1.msra.mxu0 %v252
        %v254 = vand.u32 %v169, 4294901760
        %255 = vmatprep.subr.mxu0 %v254
        %v256 = vand.u32 %v168, 4294901760
        %257 = vmatpush1.msra.mxu0 %v256
        %v258 = vand.u32 %v167, 4294901760
        %259 = vmatprep.subr.mxu0 %v258
        %v260 = vand.u32 %v166, 4294901760
        %261 = vmatpush1.msra.mxu0 %v260
        %262 = vmatprep.subr.mxu0 0.0
        %263 = vmatpush2.msra.mxu0 0.0
        %264 = vmatprep.subr.mxu0 0.0
        %265 = vmatpush2.msra.mxu0 0.0
        %266 = vmatprep.subr.mxu0 0.0
        %267 = vmatpush2.msra.mxu0 0.0
        %268 = vmatprep.subr.mxu0 0.0
        %269 = vmatpush2.msra.mxu0 0.0
        %270 = vmatprep.subr.mxu0 0.0
        %271 = vmatpush2.msra.mxu0 0.0
        %272 = vmatprep.subr.mxu0 0.0
        %273 = vmatpush2.msra.mxu0 0.0
        %274 = vmatprep.subr.mxu0 0.0
        %275 = vmatpush2.msra.mxu0 0.0
        %276 = vmatprep.subr.mxu0 0.0
        %277 = vmatpush2.msra.mxu0 0.0
        %278 = vmatprep.subr.mxu0 0.0
        %279 = vmatpush2.msra.mxu0 0.0
        %280 = vmatprep.subr.mxu0 0.0
        %281 = vmatpush2.msra.mxu0 0.0
        %282 = vmatprep.subr.mxu0 0.0
        %283 = vmatpush2.msra.mxu0 0.0
        %284 = vmatprep.subr.mxu0 0.0
        %285 = vmatpush2.msra.mxu0 0.0
        %286 = vmatprep.subr.mxu0 0.0
        %287 = vmatpush2.msra.mxu0 0.0
        %288 = vmatprep.subr.mxu0 0.0
        %289 = vmatpush2.msra.mxu0 0.0
        %290 = vmatprep.subr.mxu0 0.0
        %291 = vmatpush2.msra.mxu0 0.0
        %292 = vmatprep.subr.mxu0 0.0
        %293 = vmatpush2.msra.mxu0 0.0
        %294 = vmatprep.mubr.f32.mxu0 0.0
        %v295 = vand.u32 %v165, 4294901760
        %v296 = vsub.f32 %v165, %v295
        %v297 = vand.u32 %v296, 4294901760
        %v298 = vsub.f32 %v296, %v297
        %v299 = vand.u32 %v298, 4294901760
        %300 = vmatmul.mubr.f32.gmra.mxu0 %v299
        %v301 = vpop.f32.mrf.mxu0
        %v302 = vadd.f32 0.0, %v301
        %v303 = vpop.f32.mrf.mxu0
        %v304 = vadd.f32 0.0, %v303
        %305 = vdwg.mxu0
        %v306 = vand.u32 %v197, 4294901760
        %v307 = vsub.f32 %v197, %v306
        %v308 = vand.u32 %v307, 4294901760
        %v309 = vsub.f32 %v307, %v308
        %v310 = vand.u32 %v309, 4294901760
        %311 = vmatprep.subr.mxu0 %v310
        %v312 = vand.u32 %v196, 4294901760
        %v313 = vsub.f32 %v196, %v312
        %v314 = vand.u32 %v313, 4294901760
        %v315 = vsub.f32 %v313, %v314
        %v316 = vand.u32 %v315, 4294901760
        %317 = vmatpush1.msra.mxu0 %v316
        %v318 = vand.u32 %v195, 4294901760
        %v319 = vsub.f32 %v195, %v318
        %v320 = vand.u32 %v319, 4294901760
        %v321 = vsub.f32 %v319, %v320
        %v322 = vand.u32 %v321, 4294901760
        %323 = vmatprep.subr.mxu0 %v322
        %v324 = vand.u32 %v194, 4294901760
        %v325 = vsub.f32 %v194, %v324
        %v326 = vand.u32 %v325, 4294901760
        %v327 = vsub.f32 %v325, %v326
        %v328 = vand.u32 %v327, 4294901760
        %329 = vmatpush1.msra.mxu0 %v328
        %v330 = vand.u32 %v193, 4294901760
        %v331 = vsub.f32 %v193, %v330
        %v332 = vand.u32 %v331, 4294901760
        %v333 = vsub.f32 %v331, %v332
        %v334 = vand.u32 %v333, 4294901760
        %335 = vmatprep.subr.mxu0 %v334
        %v336 = vand.u32 %v192, 4294901760
        %v337 = vsub.f32 %v192, %v336
        %v338 = vand.u32 %v337, 4294901760
        %v339 = vsub.f32 %v337, %v338
        %v340 = vand.u32 %v339, 4294901760
        %341 = vmatpush1.msra.mxu0 %v340
        %v342 = vand.u32 %v191, 4294901760
        %v343 = vsub.f32 %v191, %v342
        %v344 = vand.u32 %v343, 4294901760
        %v345 = vsub.f32 %v343, %v344
        %v346 = vand.u32 %v345, 4294901760
        %347 = vmatprep.subr.mxu0 %v346
        %v348 = vand.u32 %v190, 4294901760
        %v349 = vsub.f32 %v190, %v348
        %v350 = vand.u32 %v349, 4294901760
        %v351 = vsub.f32 %v349, %v350
        %v352 = vand.u32 %v351, 4294901760
        %353 = vmatpush1.msra.mxu0 %v352
        %v354 = vand.u32 %v189, 4294901760
        %v355 = vsub.f32 %v189, %v354
        %v356 = vand.u32 %v355, 4294901760
        %v357 = vsub.f32 %v355, %v356
        %v358 = vand.u32 %v357, 4294901760
        %359 = vmatprep.subr.mxu0 %v358
        %v360 = vand.u32 %v188, 4294901760
        %v361 = vsub.f32 %v188, %v360
        %v362 = vand.u32 %v361, 4294901760
        %v363 = vsub.f32 %v361, %v362
        %v364 = vand.u32 %v363, 4294901760
        %365 = vmatpush1.msra.mxu0 %v364
        %v366 = vand.u32 %v187, 4294901760
        %v367 = vsub.f32 %v187, %v366
        %v368 = vand.u32 %v367, 4294901760
        %v369 = vsub.f32 %v367, %v368
        %v370 = vand.u32 %v369, 4294901760
        %371 = vmatprep.subr.mxu0 %v370
        %v372 = vand.u32 %v186, 4294901760
        %v373 = vsub.f32 %v186, %v372
        %v374 = vand.u32 %v373, 4294901760
        %v375 = vsub.f32 %v373, %v374
        %v376 = vand.u32 %v375, 4294901760
        %377 = vmatpush1.msra.mxu0 %v376
        %v378 = vand.u32 %v185, 4294901760
        %v379 = vsub.f32 %v185, %v378
        %v380 = vand.u32 %v379, 4294901760
        %v381 = vsub.f32 %v379, %v380
        %v382 = vand.u32 %v381, 4294901760
        %383 = vmatprep.subr.mxu0 %v382
        %v384 = vand.u32 %v184, 4294901760
        %v385 = vsub.f32 %v184, %v384
        %v386 = vand.u32 %v385, 4294901760
        %v387 = vsub.f32 %v385, %v386
        %v388 = vand.u32 %v387, 4294901760
        %389 = vmatpush1.msra.mxu0 %v388
        %v390 = vand.u32 %v183, 4294901760
        %v391 = vsub.f32 %v183, %v390
        %v392 = vand.u32 %v391, 4294901760
        %v393 = vsub.f32 %v391, %v392
        %v394 = vand.u32 %v393, 4294901760
        %395 = vmatprep.subr.mxu0 %v394
        %v396 = vand.u32 %v182, 4294901760
        %v397 = vsub.f32 %v182, %v396
        %v398 = vand.u32 %v397, 4294901760
        %v399 = vsub.f32 %v397, %v398
        %v400 = vand.u32 %v399, 4294901760
        %401 = vmatpush1.msra.mxu0 %v400
        %v402 = vand.u32 %v181, 4294901760
        %v403 = vsub.f32 %v181, %v402
        %v404 = vand.u32 %v403, 4294901760
        %v405 = vsub.f32 %v403, %v404
        %v406 = vand.u32 %v405, 4294901760
        %407 = vmatprep.subr.mxu0 %v406
        %v408 = vand.u32 %v180, 4294901760
        %v409 = vsub.f32 %v180, %v408
        %v410 = vand.u32 %v409, 4294901760
        %v411 = vsub.f32 %v409, %v410
        %v412 = vand.u32 %v411, 4294901760
        %413 = vmatpush1.msra.mxu0 %v412
        %v414 = vand.u32 %v179, 4294901760
        %v415 = vsub.f32 %v179, %v414
        %v416 = vand.u32 %v415, 4294901760
        %v417 = vsub.f32 %v415, %v416
        %v418 = vand.u32 %v417, 4294901760
        %419 = vmatprep.subr.mxu0 %v418
        %v420 = vand.u32 %v178, 4294901760
        %v421 = vsub.f32 %v178, %v420
        %v422 = vand.u32 %v421, 4294901760
        %v423 = vsub.f32 %v421, %v422
        %v424 = vand.u32 %v423, 4294901760
        %425 = vmatpush1.msra.mxu0 %v424
        %v426 = vand.u32 %v177, 4294901760
        %v427 = vsub.f32 %v177, %v426
        %v428 = vand.u32 %v427, 4294901760
        %v429 = vsub.f32 %v427, %v428
        %v430 = vand.u32 %v429, 4294901760
        %431 = vmatprep.subr.mxu0 %v430
        %v432 = vand.u32 %v176, 4294901760
        %v433 = vsub.f32 %v176, %v432
        %v434 = vand.u32 %v433, 4294901760
        %v435 = vsub.f32 %v433, %v434
        %v436 = vand.u32 %v435, 4294901760
        %437 = vmatpush1.msra.mxu0 %v436
        %v438 = vand.u32 %v175, 4294901760
        %v439 = vsub.f32 %v175, %v438
        %v440 = vand.u32 %v439, 4294901760
        %v441 = vsub.f32 %v439, %v440
        %v442 = vand.u32 %v441, 4294901760
        %443 = vmatprep.subr.mxu0 %v442
        %v444 = vand.u32 %v174, 4294901760
        %v445 = vsub.f32 %v174, %v444
        %v446 = vand.u32 %v445, 4294901760
        %v447 = vsub.f32 %v445, %v446
        %v448 = vand.u32 %v447, 4294901760
        %449 = vmatpush1.msra.mxu0 %v448
        %v450 = vand.u32 %v173, 4294901760
        %v451 = vsub.f32 %v173, %v450
        %v452 = vand.u32 %v451, 4294901760
        %v453 = vsub.f32 %v451, %v452
        %v454 = vand.u32 %v453, 4294901760
        %455 = vmatprep.subr.mxu0 %v454
        %v456 = vand.u32 %v172, 4294901760
        %v457 = vsub.f32 %v172, %v456
        %v458 = vand.u32 %v457, 4294901760
        %v459 = vsub.f32 %v457, %v458
        %v460 = vand.u32 %v459, 4294901760
        %461 = vmatpush1.msra.mxu0 %v460
        %v462 = vand.u32 %v171, 4294901760
        %v463 = vsub.f32 %v171, %v462
        %v464 = vand.u32 %v463, 4294901760
        %v465 = vsub.f32 %v463, %v464
        %v466 = vand.u32 %v465, 4294901760
        %467 = vmatprep.subr.mxu0 %v466
        %v468 = vand.u32 %v170, 4294901760
        %v469 = vsub.f32 %v170, %v468
        %v470 = vand.u32 %v469, 4294901760
        %v471 = vsub.f32 %v469, %v470
        %v472 = vand.u32 %v471, 4294901760
        %473 = vmatpush1.msra.mxu0 %v472
        %v474 = vand.u32 %v169, 4294901760
        %v475 = vsub.f32 %v169, %v474
        %v476 = vand.u32 %v475, 4294901760
        %v477 = vsub.f32 %v475, %v476
        %v478 = vand.u32 %v477, 4294901760
        %479 = vmatprep.subr.mxu0 %v478
        %v480 = vand.u32 %v168, 4294901760
        %v481 = vsub.f32 %v168, %v480
        %v482 = vand.u32 %v481, 4294901760
        %v483 = vsub.f32 %v481, %v482
        %v484 = vand.u32 %v483, 4294901760
        %485 = vmatpush1.msra.mxu0 %v484
        %v486 = vand.u32 %v167, 4294901760
        %v487 = vsub.f32 %v167, %v486
        %v488 = vand.u32 %v487, 4294901760
        %v489 = vsub.f32 %v487, %v488
        %v490 = vand.u32 %v489, 4294901760
        %491 = vmatprep.subr.mxu0 %v490
        %v492 = vand.u32 %v166, 4294901760
        %v493 = vsub.f32 %v166, %v492
        %v494 = vand.u32 %v493, 4294901760
        %v495 = vsub.f32 %v493, %v494
        %v496 = vand.u32 %v495, 4294901760
        %497 = vmatpush1.msra.mxu0 %v496
        %498 = vmatprep.subr.mxu0 0.0
        %499 = vmatpush2.msra.mxu0 0.0
        %500 = vmatprep.subr.mxu0 0.0
        %501 = vmatpush2.msra.mxu0 0.0
        %502 = vmatprep.subr.mxu0 0.0
        %503 = vmatpush2.msra.mxu0 0.0
        %504 = vmatprep.subr.mxu0 0.0
        %505 = vmatpush2.msra.mxu0 0.0
        %506 = vmatprep.subr.mxu0 0.0
        %507 = vmatpush2.msra.mxu0 0.0
        %508 = vmatprep.subr.mxu0 0.0
        %509 = vmatpush2.msra.mxu0 0.0
        %510 = vmatprep.subr.mxu0 0.0
        %511 = vmatpush2.msra.mxu0 0.0
        %512 = vmatprep.subr.mxu0 0.0
        %513 = vmatpush2.msra.mxu0 0.0
        %514 = vmatprep.subr.mxu0 0.0
        %515 = vmatpush2.msra.mxu0 0.0
        %516 = vmatprep.subr.mxu0 0.0
        %517 = vmatpush2.msra.mxu0 0.0
        %518 = vmatprep.subr.mxu0 0.0
        %519 = vmatpush2.msra.mxu0 0.0
        %520 = vmatprep.subr.mxu0 0.0
        %521 = vmatpush2.msra.mxu0 0.0
        %522 = vmatprep.subr.mxu0 0.0
        %523 = vmatpush2.msra.mxu0 0.0
        %524 = vmatprep.subr.mxu0 0.0
        %525 = vmatpush2.msra.mxu0 0.0
        %526 = vmatprep.subr.mxu0 0.0
        %527 = vmatpush2.msra.mxu0 0.0
        %528 = vmatprep.subr.mxu0 0.0
        %529 = vmatpush2.msra.mxu0 0.0
        %530 = vmatprep.mubr.f32.mxu0 0.0
        %v531 = vand.u32 %v165, 4294901760
        %532 = vmatmul.mubr.f32.gmra.mxu0 %v531
        %v533 = vpop.f32.mrf.mxu0
        %v534 = vadd.f32 %v302, %v533
        %v535 = vpop.f32.mrf.mxu0
        %v536 = vadd.f32 %v304, %v535
        %537 = vdwg.mxu0
        %v538 = vand.u32 %v197, 4294901760
        %v539 = vsub.f32 %v197, %v538
        %540 = vmatprep.subr.mxu0 %v539
        %v541 = vand.u32 %v196, 4294901760
        %v542 = vsub.f32 %v196, %v541
        %543 = vmatpush1.msra.mxu0 %v542
        %v544 = vand.u32 %v195, 4294901760
        %v545 = vsub.f32 %v195, %v544
        %546 = vmatprep.subr.mxu0 %v545
        %v547 = vand.u32 %v194, 4294901760
        %v548 = vsub.f32 %v194, %v547
        %549 = vmatpush1.msra.mxu0 %v548
        %v550 = vand.u32 %v193, 4294901760
        %v551 = vsub.f32 %v193, %v550
        %552 = vmatprep.subr.mxu0 %v551
        %v553 = vand.u32 %v192, 4294901760
        %v554 = vsub.f32 %v192, %v553
        %555 = vmatpush1.msra.mxu0 %v554
        %v556 = vand.u32 %v191, 4294901760
        %v557 = vsub.f32 %v191, %v556
        %558 = vmatprep.subr.mxu0 %v557
        %v559 = vand.u32 %v190, 4294901760
        %v560 = vsub.f32 %v190, %v559
        %561 = vmatpush1.msra.mxu0 %v560
        %v562 = vand.u32 %v189, 4294901760
        %v563 = vsub.f32 %v189, %v562
        %564 = vmatprep.subr.mxu0 %v563
        %v565 = vand.u32 %v188, 4294901760
        %v566 = vsub.f32 %v188, %v565
        %567 = vmatpush1.msra.mxu0 %v566
        %v568 = vand.u32 %v187, 4294901760
        %v569 = vsub.f32 %v187, %v568
        %570 = vmatprep.subr.mxu0 %v569
        %v571 = vand.u32 %v186, 4294901760
        %v572 = vsub.f32 %v186, %v571
        %573 = vmatpush1.msra.mxu0 %v572
        %v574 = vand.u32 %v185, 4294901760
        %v575 = vsub.f32 %v185, %v574
        %576 = vmatprep.subr.mxu0 %v575
        %v577 = vand.u32 %v184, 4294901760
        %v578 = vsub.f32 %v184, %v577
        %579 = vmatpush1.msra.mxu0 %v578
        %v580 = vand.u32 %v183, 4294901760
        %v581 = vsub.f32 %v183, %v580
        %582 = vmatprep.subr.mxu0 %v581
        %v583 = vand.u32 %v182, 4294901760
        %v584 = vsub.f32 %v182, %v583
        %585 = vmatpush1.msra.mxu0 %v584
        %v586 = vand.u32 %v181, 4294901760
        %v587 = vsub.f32 %v181, %v586
        %588 = vmatprep.subr.mxu0 %v587
        %v589 = vand.u32 %v180, 4294901760
        %v590 = vsub.f32 %v180, %v589
        %591 = vmatpush1.msra.mxu0 %v590
        %v592 = vand.u32 %v179, 4294901760
        %v593 = vsub.f32 %v179, %v592
        %594 = vmatprep.subr.mxu0 %v593
        %v595 = vand.u32 %v178, 4294901760
        %v596 = vsub.f32 %v178, %v595
        %597 = vmatpush1.msra.mxu0 %v596
        %v598 = vand.u32 %v177, 4294901760
        %v599 = vsub.f32 %v177, %v598
        %600 = vmatprep.subr.mxu0 %v599
        %v601 = vand.u32 %v176, 4294901760
        %v602 = vsub.f32 %v176, %v601
        %603 = vmatpush1.msra.mxu0 %v602
        %v604 = vand.u32 %v175, 4294901760
        %v605 = vsub.f32 %v175, %v604
        %606 = vmatprep.subr.mxu0 %v605
        %v607 = vand.u32 %v174, 4294901760
        %v608 = vsub.f32 %v174, %v607
        %609 = vmatpush1.msra.mxu0 %v608
        %v610 = vand.u32 %v173, 4294901760
        %v611 = vsub.f32 %v173, %v610
        %612 = vmatprep.subr.mxu0 %v611
        %v613 = vand.u32 %v172, 4294901760
        %v614 = vsub.f32 %v172, %v613
        %615 = vmatpush1.msra.mxu0 %v614
        %v616 = vand.u32 %v171, 4294901760
        %v617 = vsub.f32 %v171, %v616
        %618 = vmatprep.subr.mxu0 %v617
        %v619 = vand.u32 %v170, 4294901760
        %v620 = vsub.f32 %v170, %v619
        %621 = vmatpush1.msra.mxu0 %v620
        %v622 = vand.u32 %v169, 4294901760
        %v623 = vsub.f32 %v169, %v622
        %624 = vmatprep.subr.mxu0 %v623
        %v625 = vand.u32 %v168, 4294901760
        %v626 = vsub.f32 %v168, %v625
        %627 = vmatpush1.msra.mxu0 %v626
        %v628 = vand.u32 %v167, 4294901760
        %v629 = vsub.f32 %v167, %v628
        %630 = vmatprep.subr.mxu0 %v629
        %v631 = vand.u32 %v166, 4294901760
        %v632 = vsub.f32 %v166, %v631
        %633 = vmatpush1.msra.mxu0 %v632
        %634 = vmatprep.subr.mxu0 0.0
        %635 = vmatpush2.msra.mxu0 0.0
        %636 = vmatprep.subr.mxu0 0.0
        %637 = vmatpush2.msra.mxu0 0.0
        %638 = vmatprep.subr.mxu0 0.0
        %639 = vmatpush2.msra.mxu0 0.0
        %640 = vmatprep.subr.mxu0 0.0
        %641 = vmatpush2.msra.mxu0 0.0
        %642 = vmatprep.subr.mxu0 0.0
        %643 = vmatpush2.msra.mxu0 0.0
        %644 = vmatprep.subr.mxu0 0.0
        %645 = vmatpush2.msra.mxu0 0.0
        %646 = vmatprep.subr.mxu0 0.0
        %647 = vmatpush2.msra.mxu0 0.0
        %648 = vmatprep.subr.mxu0 0.0
        %649 = vmatpush2.msra.mxu0 0.0
        %650 = vmatprep.subr.mxu0 0.0
        %651 = vmatpush2.msra.mxu0 0.0
        %652 = vmatprep.subr.mxu0 0.0
        %653 = vmatpush2.msra.mxu0 0.0
        %654 = vmatprep.subr.mxu0 0.0
        %655 = vmatpush2.msra.mxu0 0.0
        %656 = vmatprep.subr.mxu0 0.0
        %657 = vmatpush2.msra.mxu0 0.0
        %658 = vmatprep.subr.mxu0 0.0
        %659 = vmatpush2.msra.mxu0 0.0
        %660 = vmatprep.subr.mxu0 0.0
        %661 = vmatpush2.msra.mxu0 0.0
        %662 = vmatprep.subr.mxu0 0.0
        %663 = vmatpush2.msra.mxu0 0.0
        %664 = vmatprep.subr.mxu0 0.0
        %665 = vmatpush2.msra.mxu0 0.0
        %666 = vmatprep.mubr.f32.mxu0 0.0
        %v667 = vand.u32 %v165, 4294901760
        %v668 = vsub.f32 %v165, %v667
        %669 = vmatmul.mubr.f32.gmra.mxu0 %v668
        %v670 = vpop.f32.mrf.mxu0
        %v671 = vadd.f32 %v534, %v670
        %v672 = vpop.f32.mrf.mxu0
        %v673 = vadd.f32 %v536, %v672
        %674 = vdwg.mxu0
        %v675 = vand.u32 %v197, 4294901760
        %676 = vmatprep.subr.mxu0 %v675
        %v677 = vand.u32 %v196, 4294901760
        %678 = vmatpush1.msra.mxu0 %v677
        %v679 = vand.u32 %v195, 4294901760
        %680 = vmatprep.subr.mxu0 %v679
        %v681 = vand.u32 %v194, 4294901760
        %682 = vmatpush1.msra.mxu0 %v681
        %v683 = vand.u32 %v193, 4294901760
        %684 = vmatprep.subr.mxu0 %v683
        %v685 = vand.u32 %v192, 4294901760
        %686 = vmatpush1.msra.mxu0 %v685
        %v687 = vand.u32 %v191, 4294901760
        %688 = vmatprep.subr.mxu0 %v687
        %v689 = vand.u32 %v190, 4294901760
        %690 = vmatpush1.msra.mxu0 %v689
        %v691 = vand.u32 %v189, 4294901760
        %692 = vmatprep.subr.mxu0 %v691
        %v693 = vand.u32 %v188, 4294901760
        %694 = vmatpush1.msra.mxu0 %v693
        %v695 = vand.u32 %v187, 4294901760
        %696 = vmatprep.subr.mxu0 %v695
        %v697 = vand.u32 %v186, 4294901760
        %698 = vmatpush1.msra.mxu0 %v697
        %v699 = vand.u32 %v185, 4294901760
        %700 = vmatprep.subr.mxu0 %v699
        %v701 = vand.u32 %v184, 4294901760
        %702 = vmatpush1.msra.mxu0 %v701
        %v703 = vand.u32 %v183, 4294901760
        %704 = vmatprep.subr.mxu0 %v703
        %v705 = vand.u32 %v182, 4294901760
        %706 = vmatpush1.msra.mxu0 %v705
        %v707 = vand.u32 %v181, 4294901760
        %708 = vmatprep.subr.mxu0 %v707
        %v709 = vand.u32 %v180, 4294901760
        %710 = vmatpush1.msra.mxu0 %v709
        %v711 = vand.u32 %v179, 4294901760
        %712 = vmatprep.subr.mxu0 %v711
        %v713 = vand.u32 %v178, 4294901760
        %714 = vmatpush1.msra.mxu0 %v713
        %v715 = vand.u32 %v177, 4294901760
        %716 = vmatprep.subr.mxu0 %v715
        %v717 = vand.u32 %v176, 4294901760
        %718 = vmatpush1.msra.mxu0 %v717
        %v719 = vand.u32 %v175, 4294901760
        %720 = vmatprep.subr.mxu0 %v719
        %v721 = vand.u32 %v174, 4294901760
        %722 = vmatpush1.msra.mxu0 %v721
        %v723 = vand.u32 %v173, 4294901760
        %724 = vmatprep.subr.mxu0 %v723
        %v725 = vand.u32 %v172, 4294901760
        %726 = vmatpush1.msra.mxu0 %v725
        %v727 = vand.u32 %v171, 4294901760
        %728 = vmatprep.subr.mxu0 %v727
        %v729 = vand.u32 %v170, 4294901760
        %730 = vmatpush1.msra.mxu0 %v729
        %v731 = vand.u32 %v169, 4294901760
        %732 = vmatprep.subr.mxu0 %v731
        %v733 = vand.u32 %v168, 4294901760
        %734 = vmatpush1.msra.mxu0 %v733
        %v735 = vand.u32 %v167, 4294901760
        %736 = vmatprep.subr.mxu0 %v735
        %v737 = vand.u32 %v166, 4294901760
        %738 = vmatpush1.msra.mxu0 %v737
        %739 = vmatprep.subr.mxu0 0.0
        %740 = vmatpush2.msra.mxu0 0.0
        %741 = vmatprep.subr.mxu0 0.0
        %742 = vmatpush2.msra.mxu0 0.0
        %743 = vmatprep.subr.mxu0 0.0
        %744 = vmatpush2.msra.mxu0 0.0
        %745 = vmatprep.subr.mxu0 0.0
        %746 = vmatpush2.msra.mxu0 0.0
        %747 = vmatprep.subr.mxu0 0.0
        %748 = vmatpush2.msra.mxu0 0.0
        %749 = vmatprep.subr.mxu0 0.0
        %750 = vmatpush2.msra.mxu0 0.0
        %751 = vmatprep.subr.mxu0 0.0
        %752 = vmatpush2.msra.mxu0 0.0
        %753 = vmatprep.subr.mxu0 0.0
        %754 = vmatpush2.msra.mxu0 0.0
        %755 = vmatprep.subr.mxu0 0.0
        %756 = vmatpush2.msra.mxu0 0.0
        %757 = vmatprep.subr.mxu0 0.0
        %758 = vmatpush2.msra.mxu0 0.0
        %759 = vmatprep.subr.mxu0 0.0
        %760 = vmatpush2.msra.mxu0 0.0
        %761 = vmatprep.subr.mxu0 0.0
        %762 = vmatpush2.msra.mxu0 0.0
        %763 = vmatprep.subr.mxu0 0.0
        %764 = vmatpush2.msra.mxu0 0.0
        %765 = vmatprep.subr.mxu0 0.0
        %766 = vmatpush2.msra.mxu0 0.0
        %767 = vmatprep.subr.mxu0 0.0
        %768 = vmatpush2.msra.mxu0 0.0
        %769 = vmatprep.subr.mxu0 0.0
        %770 = vmatpush2.msra.mxu0 0.0
        %771 = vmatprep.mubr.f32.mxu0 0.0
        %v772 = vand.u32 %v165, 4294901760
        %v773 = vsub.f32 %v165, %v772
        %v774 = vand.u32 %v773, 4294901760
        %775 = vmatmul.mubr.f32.gmra.mxu0 %v774
        %v776 = vpop.f32.mrf.mxu0
        %v777 = vadd.f32 %v671, %v776
        %v778 = vpop.f32.mrf.mxu0
        %v779 = vadd.f32 %v673, %v778
        %780 = vdwg.mxu0
        %v781 = vand.u32 %v197, 4294901760
        %v782 = vsub.f32 %v197, %v781
        %v783 = vand.u32 %v782, 4294901760
        %784 = vmatprep.subr.mxu0 %v783
        %v785 = vand.u32 %v196, 4294901760
        %v786 = vsub.f32 %v196, %v785
        %v787 = vand.u32 %v786, 4294901760
        %788 = vmatpush1.msra.mxu0 %v787
        %v789 = vand.u32 %v195, 4294901760
        %v790 = vsub.f32 %v195, %v789
        %v791 = vand.u32 %v790, 4294901760
        %792 = vmatprep.subr.mxu0 %v791
        %v793 = vand.u32 %v194, 4294901760
        %v794 = vsub.f32 %v194, %v793
        %v795 = vand.u32 %v794, 4294901760
        %796 = vmatpush1.msra.mxu0 %v795
        %v797 = vand.u32 %v193, 4294901760
        %v798 = vsub.f32 %v193, %v797
        %v799 = vand.u32 %v798, 4294901760
        %800 = vmatprep.subr.mxu0 %v799
        %v801 = vand.u32 %v192, 4294901760
        %v802 = vsub.f32 %v192, %v801
        %v803 = vand.u32 %v802, 4294901760
        %804 = vmatpush1.msra.mxu0 %v803
        %v805 = vand.u32 %v191, 4294901760
        %v806 = vsub.f32 %v191, %v805
        %v807 = vand.u32 %v806, 4294901760
        %808 = vmatprep.subr.mxu0 %v807
        %v809 = vand.u32 %v190, 4294901760
        %v810 = vsub.f32 %v190, %v809
        %v811 = vand.u32 %v810, 4294901760
        %812 = vmatpush1.msra.mxu0 %v811
        %v813 = vand.u32 %v189, 4294901760
        %v814 = vsub.f32 %v189, %v813
        %v815 = vand.u32 %v814, 4294901760
        %816 = vmatprep.subr.mxu0 %v815
        %v817 = vand.u32 %v188, 4294901760
        %v818 = vsub.f32 %v188, %v817
        %v819 = vand.u32 %v818, 4294901760
        %820 = vmatpush1.msra.mxu0 %v819
        %v821 = vand.u32 %v187, 4294901760
        %v822 = vsub.f32 %v187, %v821
        %v823 = vand.u32 %v822, 4294901760
        %824 = vmatprep.subr.mxu0 %v823
        %v825 = vand.u32 %v186, 4294901760
        %v826 = vsub.f32 %v186, %v825
        %v827 = vand.u32 %v826, 4294901760
        %828 = vmatpush1.msra.mxu0 %v827
        %v829 = vand.u32 %v185, 4294901760
        %v830 = vsub.f32 %v185, %v829
        %v831 = vand.u32 %v830, 4294901760
        %832 = vmatprep.subr.mxu0 %v831
        %v833 = vand.u32 %v184, 4294901760
        %v834 = vsub.f32 %v184, %v833
        %v835 = vand.u32 %v834, 4294901760
        %836 = vmatpush1.msra.mxu0 %v835
        %v837 = vand.u32 %v183, 4294901760
        %v838 = vsub.f32 %v183, %v837
        %v839 = vand.u32 %v838, 4294901760
        %840 = vmatprep.subr.mxu0 %v839
        %v841 = vand.u32 %v182, 4294901760
        %v842 = vsub.f32 %v182, %v841
        %v843 = vand.u32 %v842, 4294901760
        %844 = vmatpush1.msra.mxu0 %v843
        %v845 = vand.u32 %v181, 4294901760
        %v846 = vsub.f32 %v181, %v845
        %v847 = vand.u32 %v846, 4294901760
        %848 = vmatprep.subr.mxu0 %v847
        %v849 = vand.u32 %v180, 4294901760
        %v850 = vsub.f32 %v180, %v849
        %v851 = vand.u32 %v850, 4294901760
        %852 = vmatpush1.msra.mxu0 %v851
        %v853 = vand.u32 %v179, 4294901760
        %v854 = vsub.f32 %v179, %v853
        %v855 = vand.u32 %v854, 4294901760
        %856 = vmatprep.subr.mxu0 %v855
        %v857 = vand.u32 %v178, 4294901760
        %v858 = vsub.f32 %v178, %v857
        %v859 = vand.u32 %v858, 4294901760
        %860 = vmatpush1.msra.mxu0 %v859
        %v861 = vand.u32 %v177, 4294901760
        %v862 = vsub.f32 %v177, %v861
        %v863 = vand.u32 %v862, 4294901760
        %864 = vmatprep.subr.mxu0 %v863
        %v865 = vand.u32 %v176, 4294901760
        %v866 = vsub.f32 %v176, %v865
        %v867 = vand.u32 %v866, 4294901760
        %868 = vmatpush1.msra.mxu0 %v867
        %v869 = vand.u32 %v175, 4294901760
        %v870 = vsub.f32 %v175, %v869
        %v871 = vand.u32 %v870, 4294901760
        %872 = vmatprep.subr.mxu0 %v871
        %v873 = vand.u32 %v174, 4294901760
        %v874 = vsub.f32 %v174, %v873
        %v875 = vand.u32 %v874, 4294901760
        %876 = vmatpush1.msra.mxu0 %v875
        %v877 = vand.u32 %v173, 4294901760
        %v878 = vsub.f32 %v173, %v877
        %v879 = vand.u32 %v878, 4294901760
        %880 = vmatprep.subr.mxu0 %v879
        %v881 = vand.u32 %v172, 4294901760
        %v882 = vsub.f32 %v172, %v881
        %v883 = vand.u32 %v882, 4294901760
        %884 = vmatpush1.msra.mxu0 %v883
        %v885 = vand.u32 %v171, 4294901760
        %v886 = vsub.f32 %v171, %v885
        %v887 = vand.u32 %v886, 4294901760
        %888 = vmatprep.subr.mxu0 %v887
        %v889 = vand.u32 %v170, 4294901760
        %v890 = vsub.f32 %v170, %v889
        %v891 = vand.u32 %v890, 4294901760
        %892 = vmatpush1.msra.mxu0 %v891
        %v893 = vand.u32 %v169, 4294901760
        %v894 = vsub.f32 %v169, %v893
        %v895 = vand.u32 %v894, 4294901760
        %896 = vmatprep.subr.mxu0 %v895
        %v897 = vand.u32 %v168, 4294901760
        %v898 = vsub.f32 %v168, %v897
        %v899 = vand.u32 %v898, 4294901760
        %900 = vmatpush1.msra.mxu0 %v899
        %v901 = vand.u32 %v167, 4294901760
        %v902 = vsub.f32 %v167, %v901
        %v903 = vand.u32 %v902, 4294901760
        %904 = vmatprep.subr.mxu0 %v903
        %v905 = vand.u32 %v166, 4294901760
        %v906 = vsub.f32 %v166, %v905
        %v907 = vand.u32 %v906, 4294901760
        %908 = vmatpush1.msra.mxu0 %v907
        %909 = vmatprep.subr.mxu0 0.0
        %910 = vmatpush2.msra.mxu0 0.0
        %911 = vmatprep.subr.mxu0 0.0
        %912 = vmatpush2.msra.mxu0 0.0
        %913 = vmatprep.subr.mxu0 0.0
        %914 = vmatpush2.msra.mxu0 0.0
        %915 = vmatprep.subr.mxu0 0.0
        %916 = vmatpush2.msra.mxu0 0.0
        %917 = vmatprep.subr.mxu0 0.0
        %918 = vmatpush2.msra.mxu0 0.0
        %919 = vmatprep.subr.mxu0 0.0
        %920 = vmatpush2.msra.mxu0 0.0
        %921 = vmatprep.subr.mxu0 0.0
        %922 = vmatpush2.msra.mxu0 0.0
        %923 = vmatprep.subr.mxu0 0.0
        %924 = vmatpush2.msra.mxu0 0.0
        %925 = vmatprep.subr.mxu0 0.0
        %926 = vmatpush2.msra.mxu0 0.0
        %927 = vmatprep.subr.mxu0 0.0
        %928 = vmatpush2.msra.mxu0 0.0
        %929 = vmatprep.subr.mxu0 0.0
        %930 = vmatpush2.msra.mxu0 0.0
        %931 = vmatprep.subr.mxu0 0.0
        %932 = vmatpush2.msra.mxu0 0.0
        %933 = vmatprep.subr.mxu0 0.0
        %934 = vmatpush2.msra.mxu0 0.0
        %935 = vmatprep.subr.mxu0 0.0
        %936 = vmatpush2.msra.mxu0 0.0
        %937 = vmatprep.subr.mxu0 0.0
        %938 = vmatpush2.msra.mxu0 0.0
        %939 = vmatprep.subr.mxu0 0.0
        %940 = vmatpush2.msra.mxu0 0.0
        %941 = vmatprep.mubr.f32.mxu0 0.0
        %v942 = vand.u32 %v165, 4294901760
        %943 = vmatmul.mubr.f32.gmra.mxu0 %v942
        %v944 = vpop.f32.mrf.mxu0
        %v945 = vadd.f32 %v777, %v944
        %v946 = vpop.f32.mrf.mxu0
        %v947 = vadd.f32 %v779, %v946
        %948 = vdwg.mxu0
        %v949 = vand.u32 %v197, 4294901760
        %950 = vmatprep.subr.mxu0 %v949
        %v951 = vand.u32 %v196, 4294901760
        %952 = vmatpush1.msra.mxu0 %v951
        %v953 = vand.u32 %v195, 4294901760
        %954 = vmatprep.subr.mxu0 %v953
        %v955 = vand.u32 %v194, 4294901760
        %956 = vmatpush1.msra.mxu0 %v955
        %v957 = vand.u32 %v193, 4294901760
        %958 = vmatprep.subr.mxu0 %v957
        %v959 = vand.u32 %v192, 4294901760
        %960 = vmatpush1.msra.mxu0 %v959
        %v961 = vand.u32 %v191, 4294901760
        %962 = vmatprep.subr.mxu0 %v961
        %v963 = vand.u32 %v190, 4294901760
        %964 = vmatpush1.msra.mxu0 %v963
        %v965 = vand.u32 %v189, 4294901760
        %966 = vmatprep.subr.mxu0 %v965
        %v967 = vand.u32 %v188, 4294901760
        %968 = vmatpush1.msra.mxu0 %v967
        %v969 = vand.u32 %v187, 4294901760
        %970 = vmatprep.subr.mxu0 %v969
        %v971 = vand.u32 %v186, 4294901760
        %972 = vmatpush1.msra.mxu0 %v971
        %v973 = vand.u32 %v185, 4294901760
        %974 = vmatprep.subr.mxu0 %v973
        %v975 = vand.u32 %v184, 4294901760
        %976 = vmatpush1.msra.mxu0 %v975
        %v977 = vand.u32 %v183, 4294901760
        %978 = vmatprep.subr.mxu0 %v977
        %v979 = vand.u32 %v182, 4294901760
        %980 = vmatpush1.msra.mxu0 %v979
        %v981 = vand.u32 %v181, 4294901760
        %982 = vmatprep.subr.mxu0 %v981
        %v983 = vand.u32 %v180, 4294901760
        %984 = vmatpush1.msra.mxu0 %v983
        %v985 = vand.u32 %v179, 4294901760
        %986 = vmatprep.subr.mxu0 %v985
        %v987 = vand.u32 %v178, 4294901760
        %988 = vmatpush1.msra.mxu0 %v987
        %v989 = vand.u32 %v177, 4294901760
        %990 = vmatprep.subr.mxu0 %v989
        %v991 = vand.u32 %v176, 4294901760
        %992 = vmatpush1.msra.mxu0 %v991
        %v993 = vand.u32 %v175, 4294901760
        %994 = vmatprep.subr.mxu0 %v993
        %v995 = vand.u32 %v174, 4294901760
        %996 = vmatpush1.msra.mxu0 %v995
        %v997 = vand.u32 %v173, 4294901760
        %998 = vmatprep.subr.mxu0 %v997
        %v999 = vand.u32 %v172, 4294901760
        %1000 = vmatpush1.msra.mxu0 %v999
        %v1001 = vand.u32 %v171, 4294901760
        %1002 = vmatprep.subr.mxu0 %v1001
        %v1003 = vand.u32 %v170, 4294901760
        %1004 = vmatpush1.msra.mxu0 %v1003
        %v1005 = vand.u32 %v169, 4294901760
        %1006 = vmatprep.subr.mxu0 %v1005
        %v1007 = vand.u32 %v168, 4294901760
        %1008 = vmatpush1.msra.mxu0 %v1007
        %v1009 = vand.u32 %v167, 4294901760
        %1010 = vmatprep.subr.mxu0 %v1009
        %v1011 = vand.u32 %v166, 4294901760
        %1012 = vmatpush1.msra.mxu0 %v1011
        %1013 = vmatprep.subr.mxu0 0.0
        %1014 = vmatpush2.msra.mxu0 0.0
        %1015 = vmatprep.subr.mxu0 0.0
        %1016 = vmatpush2.msra.mxu0 0.0
        %1017 = vmatprep.subr.mxu0 0.0
        %1018 = vmatpush2.msra.mxu0 0.0
        %1019 = vmatprep.subr.mxu0 0.0
        %1020 = vmatpush2.msra.mxu0 0.0
        %1021 = vmatprep.subr.mxu0 0.0
        %1022 = vmatpush2.msra.mxu0 0.0
        %1023 = vmatprep.subr.mxu0 0.0
        %1024 = vmatpush2.msra.mxu0 0.0
        %1025 = vmatprep.subr.mxu0 0.0
        %1026 = vmatpush2.msra.mxu0 0.0
        %1027 = vmatprep.subr.mxu0 0.0
        %1028 = vmatpush2.msra.mxu0 0.0
        %1029 = vmatprep.subr.mxu0 0.0
        %1030 = vmatpush2.msra.mxu0 0.0
        %1031 = vmatprep.subr.mxu0 0.0
        %1032 = vmatpush2.msra.mxu0 0.0
        %1033 = vmatprep.subr.mxu0 0.0
        %1034 = vmatpush2.msra.mxu0 0.0
        %1035 = vmatprep.subr.mxu0 0.0
        %1036 = vmatpush2.msra.mxu0 0.0
        %1037 = vmatprep.subr.mxu0 0.0
        %1038 = vmatpush2.msra.mxu0 0.0
        %1039 = vmatprep.subr.mxu0 0.0
        %1040 = vmatpush2.msra.mxu0 0.0
        %1041 = vmatprep.subr.mxu0 0.0
        %1042 = vmatpush2.msra.mxu0 0.0
        %1043 = vmatprep.subr.mxu0 0.0
        %1044 = vmatpush2.msra.mxu0 0.0
        %1045 = vmatprep.mubr.f32.mxu0 0.0
        %v1046 = vand.u32 %v165, 4294901760
        %1047 = vmatmul.mubr.f32.gmra.mxu0 %v1046
        %v1048 = vpop.f32.mrf.mxu0
        %v1049 = vadd.f32 %v945, %v1048
        %v1050 = vpop.f32.mrf.mxu0
        %v1051 = vadd.f32 %v947, %v1050
        %1052 = vdwg.mxu0
        %1053 = vst [vmem:[%s149] sm:$0xff] %v1049
        %vm1054 = vcmask 588800
        %1055 = vst.msk [vmem:[%s149 + $0x8] sm:$0xff] %vm1054, %v1051
        %s1056 = sand.u32 %s72, 1
        %s1057 = scalar_lea.sflag [#allocation4], %s1056
        %s1058 = sand.u32 %s72, 1
        %s1059 = smul.addr %s1058, 16
        %s1060 = scalar_lea.vmem [#allocation5], %s1059
        // Predicated region
        $region33: #{lookup.1} parent=27 // pred_check
          %p1061 = pneg %p82
        $region34: #{lookup.1} parent=27 // pred_check_branch
          %1063 = sbr.rel (%p1061) target = $region36
        $region35: #{lookup.1} parent=27 // pred_region
          %s1065 = ssub.s32 256, 256
          %1066 = vsyncadd %s1057, %s1065
          %s1067 = smul.addr %s17, 2
          %s1068 = smul.addr %s1067, 128
          %s1069 = scalar_lea.hbm %s2, %s1068
          %s1071 = sshll.u32 %s1060, 4
          %s1072 = int_to_ptr.vmem [resolvable:$true] %s1071
          %1074 = dma.vmem_to_hbm [thread:$0]  %s1072, 256, %s1069, %s1057
        $region36: #{lookup.1} parent=27 // pred_fallthru
          _
      $region28: #{lookup.1} parent=5 // pred_fallthru
        _
      %p1075 = scmp.le.s32.totalorder 2, %s12
      // Predicated region
      $region37: #{lookup.1} parent=5 // pred_check
        %p1076 = pneg %p1075
      $region38: #{lookup.1} parent=5 // pred_check_branch
        %1078 = sbr.rel (%p1076) target = $region40
      $region39: #{lookup.1} parent=5 // pred_region
        %s1079 = ssub.s32 %s12, 2
        // Predicated region
        $region41: #{lookup.1} parent=39 // pred_check
          %p1080 = pneg %p88
        $region42: #{lookup.1} parent=39 // pred_check_branch
          %1082 = sbr.rel (%p1080) target = $region44
        $region43: #{lookup.1} parent=39 // pred_region
          %s1083 = sand.u32 %s73, 1
          %s1084 = scalar_lea.sflag [#allocation4], %s1083
          %s1085 = sand.u32 %s73, 1
          %s1086 = smul.addr %s1085, 16
          %s1087 = scalar_lea.vmem [#allocation5], %s1086
          %1088 = dma.done %s1084, 256
        $region44: #{lookup.1} parent=39 // pred_fallthru
          _
      $region40: #{lookup.1} parent=5 // pred_fallthru
        _
    $region6: #{lookup.1} parent=1 // loop_footer
      %s16 = sadd.s32 1, %s12
    $region7: #{lookup.1} parent=1 // loop_footer_branch
      %11 = sbr.rel target = $region3
    $region8: #{lookup.1} parent=1 // loop_exit
      _
    %1089 = vsyncpa [#allocation3], 1
    %s1090 = scalar_lea.sflag [#allocation3], 1
    %1091 = vsyncpa %s1090, 1
    %1092 = vsyncpa [#allocation4], 1
    %s1093 = scalar_lea.sflag [#allocation4], 1
    %1094 = vsyncpa %s1093, 1

</llo_original>
